<compile_context>
chip_gen: v6e
topology: v6e:2x2x1
jax: 0.10.0
libtpu: 0.0.40
codegen_flags: <defaults>
</compile_context>

<pallas_src>
import jax
import jax.numpy as jnp
from jax import lax
from jax.experimental import pallas as pl
from jax.experimental.pallas import tpu as pltpu

_SUB = 8      # sublanes per vreg tile
_LANE = 128   # lanes per vreg tile


def _round_up(x, m):
    return (x + m - 1) // m * m


def _adder_kernel(params_ref, x_ref, o_ref, h_ref):
    """One (batch-tile, time-chunk) grid step of the adder recurrence.

    params_ref : SMEM (5,)                  [w1, b1, w2, b2, w3]
    x_ref      : VMEM (t_chunk, 8, b_lane)  pre-summed operands
    o_ref      : VMEM (t_chunk, 8, b_lane)  per-step outputs
    h_ref      : VMEM (8, b_lane)           carry, persists across time chunks
    """
    # Scalar parameters: read once per grid step, outside the time loop.
    w1 = params_ref[0]
    b1 = params_ref[1]
    w2 = params_ref[2]
    b2 = params_ref[3]
    w3 = params_ref[4]
    pi = jnp.float32(jnp.pi)

    # New batch tile -> reset the carry (time is the innermost grid axis).
    @pl.when(pl.program_id(1) == 0)
    def _():
        h_ref[...] = jnp.zeros_like(h_ref)

    t_chunk = x_ref.shape[0]

    def step(t, h):
        s = x_ref[t] + h                              # (8, b_lane) full tiles
        # NOTE: for integer-valued bit inputs and the default params this cos
        # chain equals (s mod 2); kept as cos to preserve the module's exact
        # semantics for arbitrary inputs / parameters.
        out = w1 * jnp.cos(pi * s) + b1               # sum bit
        o_ref[t] = (w2 * out + b2).astype(o_ref.dtype)
        return w3 * (s - out)                         # new carry

    unroll = True if t_chunk <= 32 else 8
    h_ref[...] = lax.fori_loop(0, t_chunk, step, h_ref[...], unroll=unroll)


def neural_adder(x, params, *, broadcast_n=True,
                 block_vmem_budget_bytes=24 * 1024 * 1024,
                 max_lanes_per_block=2048):
    """NeuralAdder forward.  x: (B, N, T); params: (5,) [w1, b1, w2, b2, w3].

    Returns (B, N, T) if broadcast_n else (B, 1, T).  All N rows of the result
    are identical, so pass broadcast_n=False to skip the N-way HBM write.
    """
    assert x.ndim == 3, "expected (batch, n_operands, time)"
    B, N, T = x.shape
    orig_dtype = x.dtype

    # The cell sums its input over N every step and the zero initial carry
    # keeps all N rows identical, so pre-reduce over N once (exact). f32 math.
    xs = jnp.sum(x.astype(jnp.float32), axis=1)        # (B, T)
    xt = jnp.transpose(xs, (1, 0))                      # (T, B) batch on lanes

    # --- sublane-dense layout: (T_pad, 8, L), L a multiple of 128 -----------
    B_pad = _round_up(max(B, 1), _SUB * _LANE)          # multiple of 1024
    L = B_pad // _SUB                                   # multiple of 128

    # Batch-tile count: >= 2 when the padded batch allows it (v7x megacore),
    # lane width per block capped, tile count must divide the lane tiles.
    n_lane_tiles = L // _LANE
    n_b = 2 if n_lane_tiles >= 2 else 1
    n_b = max(n_b, -(-L // max_lanes_per_block))
    while n_lane_tiles % n_b:
        n_b += 1
    b_lane = L // n_b

    # Time-chunk size from the VMEM budget: (in + out) blocks, double-buffered
    # -> 4 * t_chunk * 8 * b_lane * 4 bytes.
    t_chunk = max(1, min(T, block_vmem_budget_bytes // (16 * _SUB * b_lane)))
    T_pad = _round_up(T, t_chunk)
    n_t = T_pad // t_chunk

    xt = jnp.pad(xt, ((0, T_pad - T), (0, B_pad - B)))
    x3 = xt.reshape(T_pad, _SUB, L)

    out3 = pl.pallas_call(
        _adder_kernel,
        out_shape=jax.ShapeDtypeStruct((T_pad, _SUB, L), jnp.float32),
        grid_spec=pltpu.PrefetchScalarGridSpec(
            num_scalar_prefetch=0,
            grid=(n_b, n_t),
            in_specs=[
                pl.BlockSpec(memory_space=pltpu.MemorySpace.SMEM),     # params
                pl.BlockSpec((t_chunk, _SUB, b_lane), lambda b, t: (t, 0, b)),
            ],
            out_specs=pl.BlockSpec((t_chunk, _SUB, b_lane),
                                   lambda b, t: (t, 0, b)),
            scratch_shapes=[pltpu.VMEM((_SUB, b_lane), jnp.float32)],
        ),
        compiler_params=pltpu.CompilerParams(
            # Batch tiles are independent -> parallel (megacore on v7x);
            # time chunks carry h sequentially -> arbitrary.
            dimension_semantics=("parallel", "arbitrary"),
            vmem_limit_bytes=48 * 1024 * 1024,
        ),
    )(params.astype(jnp.float32), x3)

    y = out3[:T].reshape(T, B_pad)[:, :B]               # (T, B)
    y = jnp.transpose(y, (1, 0)).astype(orig_dtype)      # (B, T)
    if broadcast_n:
        return jnp.broadcast_to(y[:, None, :], (B, N, T))
    return y[:, None, :]


def neural_adder_ref(x, params):
    """Pure-JAX reference mirroring the PyTorch module step-by-step."""
    w1, b1, w2, b2, w3 = [params[i] for i in range(5)]
    xt = jnp.transpose(x, (2, 1, 0))        # torch transpose(0, -1): (T, N, B)
    T, N, B = xt.shape
    h = jnp.zeros((N, B), x.dtype)
    outs = []
    for i in range(T):
        xsum = jnp.sum(xt[i], axis=0, keepdims=True)
        s = xsum + h
        o = w1 * jnp.cos(jnp.pi * s) + b1
        h = w3 * (s - o)
        outs.append(w2 * o + b2)
    out = jnp.stack(outs, 0)                # (T, N, B)
    return jnp.transpose(out, (2, 1, 0))    # (B, N, T)


if __name__ == "__main__":
    # AdderCell(final_result=True) init: w1=-0.5, b1=0.5, w2=2.0, b2=-1.0, w3=0.5
    params = jnp.array([-0.5, 0.5, 2.0, -1.0, 0.5], dtype=jnp.float32)

    # Small input: batch=2, two operands, 8 "bit" time steps.
    key = jax.random.PRNGKey(0)
    bits = jax.random.bernoulli(key, p=0.5, shape=(2, 2, 8)).astype(jnp.float32)

    out = jax.jit(neural_adder)(bits, params)
    out = jax.block_until_ready(out)

    ref = neural_adder_ref(bits, params)
    assert out.shape == bits.shape
    assert jnp.allclose(out, ref, atol=1e-5, rtol=1e-5), "mismatch vs reference"

    print("KERNEL_OK")
</pallas_src>

<mosaic_0001>
module attributes {stable_mosaic.version = 11 : i64} {
  func.func @_adder_kernel(%arg0: i32, %arg1: i32, %arg2: memref<5xf32, #tpu.memory_space<smem>>, %arg3: memref<8x8x128xf32, #tpu.memory_space<vmem>>, %arg4: memref<8x8x128xf32, #tpu.memory_space<vmem>>, %arg5: memref<8x128xf32, #tpu.memory_space<vmem>>) attributes {dimension_semantics = [#tpu.dimension_semantics<parallel>, #tpu.dimension_semantics<arbitrary>], iteration_bounds = array<i64: 1, 1>, scalar_prefetch = 0 : i64, scratch_operands = 1 : i64, tpu.core_type = #tpu.core_type<tc>, window_params = [{transform_indices = @transform_0, window_bounds = array<i64: 5>}, {transform_indices = @transform_1, window_bounds = array<i64: 8, 8, 128>}, {transform_indices = @transform_2, window_bounds = array<i64: 8, 8, 128>}]} {
    %c0 = arith.constant 0 : index
    %0 = memref.load %arg2[%c0] : memref<5xf32, #tpu.memory_space<smem>>
    %c1 = arith.constant 1 : index
    %1 = memref.load %arg2[%c1] : memref<5xf32, #tpu.memory_space<smem>>
    %c2 = arith.constant 2 : index
    %2 = memref.load %arg2[%c2] : memref<5xf32, #tpu.memory_space<smem>>
    %c3 = arith.constant 3 : index
    %3 = memref.load %arg2[%c3] : memref<5xf32, #tpu.memory_space<smem>>
    %c4 = arith.constant 4 : index
    %4 = memref.load %arg2[%c4] : memref<5xf32, #tpu.memory_space<smem>>
    %c0_i32 = arith.constant 0 : i32
    %5 = arith.cmpi eq, %arg1, %c0_i32 : i32
    %6 = arith.extui %5 : i1 to i32
    %c0_i32_0 = arith.constant 0 : i32
    %7 = arith.cmpi ne, %6, %c0_i32_0 : i32
    scf.if %7 {
      %cst_38 = arith.constant 0.000000e+00 : f32
      %186 = vector.broadcast %cst_38 : f32 to vector<8x128xf32>
      %c0_39 = arith.constant 0 : index
      %c0_40 = arith.constant 0 : index
      %187 = vector.load %arg5[%c0_39, %c0_40] : memref<8x128xf32, #tpu.memory_space<vmem>>, vector<8x128xf32>
      tpu.vector_store %arg5[%c0_39, %c0_40], %186 {strides = array<i32>} : memref<8x128xf32, #tpu.memory_space<vmem>>, vector<8x128xf32>,
    } else {
    }
    %c0_1 = arith.constant 0 : index
    %c0_2 = arith.constant 0 : index
    %8 = vector.load %arg5[%c0_1, %c0_2] : memref<8x128xf32, #tpu.memory_space<vmem>>, vector<8x128xf32>
    %cst = arith.constant 3.14159274 : f32
    %c0_i32_3 = arith.constant 0 : i32
    %9 = arith.index_cast %c0_i32_3 : i32 to index
    %c0_4 = arith.constant 0 : index
    %c0_5 = arith.constant 0 : index
    %10 = vector.load %arg3[%9, %c0_4, %c0_5] : memref<8x8x128xf32, #tpu.memory_space<vmem>>, vector<1x8x128xf32>
    %11 = vector.shape_cast %10 : vector<1x8x128xf32> to vector<8x128xf32>
    %12 = arith.addf %11, %8 : vector<8x128xf32>
    %13 = vector.broadcast %cst : f32 to vector<8x128xf32>
    %14 = arith.mulf %13, %12 : vector<8x128xf32>
    %15 = math.cos %14 : vector<8x128xf32>
    %16 = vector.broadcast %0 : f32 to vector<8x128xf32>
    %17 = arith.mulf %16, %15 : vector<8x128xf32>
    %18 = vector.broadcast %1 : f32 to vector<8x128xf32>
    %19 = arith.addf %17, %18 : vector<8x128xf32>
    %20 = vector.broadcast %2 : f32 to vector<8x128xf32>
    %21 = arith.mulf %20, %19 : vector<8x128xf32>
    %22 = vector.broadcast %3 : f32 to vector<8x128xf32>
    %23 = arith.addf %21, %22 : vector<8x128xf32>
    %24 = arith.index_cast %c0_i32_3 : i32 to index
    %c0_6 = arith.constant 0 : index
    %c0_7 = arith.constant 0 : index
    %25 = vector.load %arg4[%24, %c0_6, %c0_7] : memref<8x8x128xf32, #tpu.memory_space<vmem>>, vector<1x8x128xf32>
    %26 = vector.shape_cast %25 : vector<1x8x128xf32> to vector<8x128xf32>
    %27 = vector.shape_cast %23 : vector<8x128xf32> to vector<1x8x128xf32>
    tpu.vector_store %arg4[%24, %c0_6, %c0_7], %27 {strides = array<i32>} : memref<8x8x128xf32, #tpu.memory_space<vmem>>, vector<1x8x128xf32>,
    %28 = arith.subf %12, %19 : vector<8x128xf32>
    %29 = vector.broadcast %4 : f32 to vector<8x128xf32>
    %30 = arith.mulf %29, %28 : vector<8x128xf32>
    %c1_i32 = arith.constant 1 : i32
    %31 = arith.index_cast %c1_i32 : i32 to index
    %c0_8 = arith.constant 0 : index
    %c0_9 = arith.constant 0 : index
    %32 = vector.load %arg3[%31, %c0_8, %c0_9] : memref<8x8x128xf32, #tpu.memory_space<vmem>>, vector<1x8x128xf32>
    %33 = vector.shape_cast %32 : vector<1x8x128xf32> to vector<8x128xf32>
    %34 = arith.addf %33, %30 : vector<8x128xf32>
    %35 = vector.broadcast %cst : f32 to vector<8x128xf32>
    %36 = arith.mulf %35, %34 : vector<8x128xf32>
    %37 = math.cos %36 : vector<8x128xf32>
    %38 = vector.broadcast %0 : f32 to vector<8x128xf32>
    %39 = arith.mulf %38, %37 : vector<8x128xf32>
    %40 = vector.broadcast %1 : f32 to vector<8x128xf32>
    %41 = arith.addf %39, %40 : vector<8x128xf32>
    %42 = vector.broadcast %2 : f32 to vector<8x128xf32>
    %43 = arith.mulf %42, %41 : vector<8x128xf32>
    %44 = vector.broadcast %3 : f32 to vector<8x128xf32>
    %45 = arith.addf %43, %44 : vector<8x128xf32>
    %46 = arith.index_cast %c1_i32 : i32 to index
    %c0_10 = arith.constant 0 : index
    %c0_11 = arith.constant 0 : index
    %47 = vector.load %arg4[%46, %c0_10, %c0_11] : memref<8x8x128xf32, #tpu.memory_space<vmem>>, vector<1x8x128xf32>
    %48 = vector.shape_cast %47 : vector<1x8x128xf32> to vector<8x128xf32>
    %49 = vector.shape_cast %45 : vector<8x128xf32> to vector<1x8x128xf32>
    tpu.vector_store %arg4[%46, %c0_10, %c0_11], %49 {strides = array<i32>} : memref<8x8x128xf32, #tpu.memory_space<vmem>>, vector<1x8x128xf32>,
    %50 = arith.subf %34, %41 : vector<8x128xf32>
    %51 = vector.broadcast %4 : f32 to vector<8x128xf32>
    %52 = arith.mulf %51, %50 : vector<8x128xf32>
    %c2_i32 = arith.constant 2 : i32
    %53 = arith.index_cast %c2_i32 : i32 to index
    %c0_12 = arith.constant 0 : index
    %c0_13 = arith.constant 0 : index
    %54 = vector.load %arg3[%53, %c0_12, %c0_13] : memref<8x8x128xf32, #tpu.memory_space<vmem>>, vector<1x8x128xf32>
    %55 = vector.shape_cast %54 : vector<1x8x128xf32> to vector<8x128xf32>
    %56 = arith.addf %55, %52 : vector<8x128xf32>
    %57 = vector.broadcast %cst : f32 to vector<8x128xf32>
    %58 = arith.mulf %57, %56 : vector<8x128xf32>
    %59 = math.cos %58 : vector<8x128xf32>
    %60 = vector.broadcast %0 : f32 to vector<8x128xf32>
    %61 = arith.mulf %60, %59 : vector<8x128xf32>
    %62 = vector.broadcast %1 : f32 to vector<8x128xf32>
    %63 = arith.addf %61, %62 : vector<8x128xf32>
    %64 = vector.broadcast %2 : f32 to vector<8x128xf32>
    %65 = arith.mulf %64, %63 : vector<8x128xf32>
    %66 = vector.broadcast %3 : f32 to vector<8x128xf32>
    %67 = arith.addf %65, %66 : vector<8x128xf32>
    %68 = arith.index_cast %c2_i32 : i32 to index
    %c0_14 = arith.constant 0 : index
    %c0_15 = arith.constant 0 : index
    %69 = vector.load %arg4[%68, %c0_14, %c0_15] : memref<8x8x128xf32, #tpu.memory_space<vmem>>, vector<1x8x128xf32>
    %70 = vector.shape_cast %69 : vector<1x8x128xf32> to vector<8x128xf32>
    %71 = vector.shape_cast %67 : vector<8x128xf32> to vector<1x8x128xf32>
    tpu.vector_store %arg4[%68, %c0_14, %c0_15], %71 {strides = array<i32>} : memref<8x8x128xf32, #tpu.memory_space<vmem>>, vector<1x8x128xf32>,
    %72 = arith.subf %56, %63 : vector<8x128xf32>
    %73 = vector.broadcast %4 : f32 to vector<8x128xf32>
    %74 = arith.mulf %73, %72 : vector<8x128xf32>
    %c3_i32 = arith.constant 3 : i32
    %75 = arith.index_cast %c3_i32 : i32 to index
    %c0_16 = arith.constant 0 : index
    %c0_17 = arith.constant 0 : index
    %76 = vector.load %arg3[%75, %c0_16, %c0_17] : memref<8x8x128xf32, #tpu.memory_space<vmem>>, vector<1x8x128xf32>
    %77 = vector.shape_cast %76 : vector<1x8x128xf32> to vector<8x128xf32>
    %78 = arith.addf %77, %74 : vector<8x128xf32>
    %79 = vector.broadcast %cst : f32 to vector<8x128xf32>
    %80 = arith.mulf %79, %78 : vector<8x128xf32>
    %81 = math.cos %80 : vector<8x128xf32>
    %82 = vector.broadcast %0 : f32 to vector<8x128xf32>
    %83 = arith.mulf %82, %81 : vector<8x128xf32>
    %84 = vector.broadcast %1 : f32 to vector<8x128xf32>
    %85 = arith.addf %83, %84 : vector<8x128xf32>
    %86 = vector.broadcast %2 : f32 to vector<8x128xf32>
    %87 = arith.mulf %86, %85 : vector<8x128xf32>
    %88 = vector.broadcast %3 : f32 to vector<8x128xf32>
    %89 = arith.addf %87, %88 : vector<8x128xf32>
    %90 = arith.index_cast %c3_i32 : i32 to index
    %c0_18 = arith.constant 0 : index
    %c0_19 = arith.constant 0 : index
    %91 = vector.load %arg4[%90, %c0_18, %c0_19] : memref<8x8x128xf32, #tpu.memory_space<vmem>>, vector<1x8x128xf32>
    %92 = vector.shape_cast %91 : vector<1x8x128xf32> to vector<8x128xf32>
    %93 = vector.shape_cast %89 : vector<8x128xf32> to vector<1x8x128xf32>
    tpu.vector_store %arg4[%90, %c0_18, %c0_19], %93 {strides = array<i32>} : memref<8x8x128xf32, #tpu.memory_space<vmem>>, vector<1x8x128xf32>,
    %94 = arith.subf %78, %85 : vector<8x128xf32>
    %95 = vector.broadcast %4 : f32 to vector<8x128xf32>
    %96 = arith.mulf %95, %94 : vector<8x128xf32>
    %c4_i32 = arith.constant 4 : i32
    %97 = arith.index_cast %c4_i32 : i32 to index
    %c0_20 = arith.constant 0 : index
    %c0_21 = arith.constant 0 : index
    %98 = vector.load %arg3[%97, %c0_20, %c0_21] : memref<8x8x128xf32, #tpu.memory_space<vmem>>, vector<1x8x128xf32>
    %99 = vector.shape_cast %98 : vector<1x8x128xf32> to vector<8x128xf32>
    %100 = arith.addf %99, %96 : vector<8x128xf32>
    %101 = vector.broadcast %cst : f32 to vector<8x128xf32>
    %102 = arith.mulf %101, %100 : vector<8x128xf32>
    %103 = math.cos %102 : vector<8x128xf32>
    %104 = vector.broadcast %0 : f32 to vector<8x128xf32>
    %105 = arith.mulf %104, %103 : vector<8x128xf32>
    %106 = vector.broadcast %1 : f32 to vector<8x128xf32>
    %107 = arith.addf %105, %106 : vector<8x128xf32>
    %108 = vector.broadcast %2 : f32 to vector<8x128xf32>
    %109 = arith.mulf %108, %107 : vector<8x128xf32>
    %110 = vector.broadcast %3 : f32 to vector<8x128xf32>
    %111 = arith.addf %109, %110 : vector<8x128xf32>
    %112 = arith.index_cast %c4_i32 : i32 to index
    %c0_22 = arith.constant 0 : index
    %c0_23 = arith.constant 0 : index
    %113 = vector.load %arg4[%112, %c0_22, %c0_23] : memref<8x8x128xf32, #tpu.memory_space<vmem>>, vector<1x8x128xf32>
    %114 = vector.shape_cast %113 : vector<1x8x128xf32> to vector<8x128xf32>
    %115 = vector.shape_cast %111 : vector<8x128xf32> to vector<1x8x128xf32>
    tpu.vector_store %arg4[%112, %c0_22, %c0_23], %115 {strides = array<i32>} : memref<8x8x128xf32, #tpu.memory_space<vmem>>, vector<1x8x128xf32>,
    %116 = arith.subf %100, %107 : vector<8x128xf32>
    %117 = vector.broadcast %4 : f32 to vector<8x128xf32>
    %118 = arith.mulf %117, %116 : vector<8x128xf32>
    %c5_i32 = arith.constant 5 : i32
    %119 = arith.index_cast %c5_i32 : i32 to index
    %c0_24 = arith.constant 0 : index
    %c0_25 = arith.constant 0 : index
    %120 = vector.load %arg3[%119, %c0_24, %c0_25] : memref<8x8x128xf32, #tpu.memory_space<vmem>>, vector<1x8x128xf32>
    %121 = vector.shape_cast %120 : vector<1x8x128xf32> to vector<8x128xf32>
    %122 = arith.addf %121, %118 : vector<8x128xf32>
    %123 = vector.broadcast %cst : f32 to vector<8x128xf32>
    %124 = arith.mulf %123, %122 : vector<8x128xf32>
    %125 = math.cos %124 : vector<8x128xf32>
    %126 = vector.broadcast %0 : f32 to vector<8x128xf32>
    %127 = arith.mulf %126, %125 : vector<8x128xf32>
    %128 = vector.broadcast %1 : f32 to vector<8x128xf32>
    %129 = arith.addf %127, %128 : vector<8x128xf32>
    %130 = vector.broadcast %2 : f32 to vector<8x128xf32>
    %131 = arith.mulf %130, %129 : vector<8x128xf32>
    %132 = vector.broadcast %3 : f32 to vector<8x128xf32>
    %133 = arith.addf %131, %132 : vector<8x128xf32>
    %134 = arith.index_cast %c5_i32 : i32 to index
    %c0_26 = arith.constant 0 : index
    %c0_27 = arith.constant 0 : index
    %135 = vector.load %arg4[%134, %c0_26, %c0_27] : memref<8x8x128xf32, #tpu.memory_space<vmem>>, vector<1x8x128xf32>
    %136 = vector.shape_cast %135 : vector<1x8x128xf32> to vector<8x128xf32>
    %137 = vector.shape_cast %133 : vector<8x128xf32> to vector<1x8x128xf32>
    tpu.vector_store %arg4[%134, %c0_26, %c0_27], %137 {strides = array<i32>} : memref<8x8x128xf32, #tpu.memory_space<vmem>>, vector<1x8x128xf32>,
    %138 = arith.subf %122, %129 : vector<8x128xf32>
    %139 = vector.broadcast %4 : f32 to vector<8x128xf32>
    %140 = arith.mulf %139, %138 : vector<8x128xf32>
    %c6_i32 = arith.constant 6 : i32
    %141 = arith.index_cast %c6_i32 : i32 to index
    %c0_28 = arith.constant 0 : index
    %c0_29 = arith.constant 0 : index
    %142 = vector.load %arg3[%141, %c0_28, %c0_29] : memref<8x8x128xf32, #tpu.memory_space<vmem>>, vector<1x8x128xf32>
    %143 = vector.shape_cast %142 : vector<1x8x128xf32> to vector<8x128xf32>
    %144 = arith.addf %143, %140 : vector<8x128xf32>
    %145 = vector.broadcast %cst : f32 to vector<8x128xf32>
    %146 = arith.mulf %145, %144 : vector<8x128xf32>
    %147 = math.cos %146 : vector<8x128xf32>
    %148 = vector.broadcast %0 : f32 to vector<8x128xf32>
    %149 = arith.mulf %148, %147 : vector<8x128xf32>
    %150 = vector.broadcast %1 : f32 to vector<8x128xf32>
    %151 = arith.addf %149, %150 : vector<8x128xf32>
    %152 = vector.broadcast %2 : f32 to vector<8x128xf32>
    %153 = arith.mulf %152, %151 : vector<8x128xf32>
    %154 = vector.broadcast %3 : f32 to vector<8x128xf32>
    %155 = arith.addf %153, %154 : vector<8x128xf32>
    %156 = arith.index_cast %c6_i32 : i32 to index
    %c0_30 = arith.constant 0 : index
    %c0_31 = arith.constant 0 : index
    %157 = vector.load %arg4[%156, %c0_30, %c0_31] : memref<8x8x128xf32, #tpu.memory_space<vmem>>, vector<1x8x128xf32>
    %158 = vector.shape_cast %157 : vector<1x8x128xf32> to vector<8x128xf32>
    %159 = vector.shape_cast %155 : vector<8x128xf32> to vector<1x8x128xf32>
    tpu.vector_store %arg4[%156, %c0_30, %c0_31], %159 {strides = array<i32>} : memref<8x8x128xf32, #tpu.memory_space<vmem>>, vector<1x8x128xf32>,
    %160 = arith.subf %144, %151 : vector<8x128xf32>
    %161 = vector.broadcast %4 : f32 to vector<8x128xf32>
    %162 = arith.mulf %161, %160 : vector<8x128xf32>
    %c7_i32 = arith.constant 7 : i32
    %163 = arith.index_cast %c7_i32 : i32 to index
    %c0_32 = arith.constant 0 : index
    %c0_33 = arith.constant 0 : index
    %164 = vector.load %arg3[%163, %c0_32, %c0_33] : memref<8x8x128xf32, #tpu.memory_space<vmem>>, vector<1x8x128xf32>
    %165 = vector.shape_cast %164 : vector<1x8x128xf32> to vector<8x128xf32>
    %166 = arith.addf %165, %162 : vector<8x128xf32>
    %167 = vector.broadcast %cst : f32 to vector<8x128xf32>
    %168 = arith.mulf %167, %166 : vector<8x128xf32>
    %169 = math.cos %168 : vector<8x128xf32>
    %170 = vector.broadcast %0 : f32 to vector<8x128xf32>
    %171 = arith.mulf %170, %169 : vector<8x128xf32>
    %172 = vector.broadcast %1 : f32 to vector<8x128xf32>
    %173 = arith.addf %171, %172 : vector<8x128xf32>
    %174 = vector.broadcast %2 : f32 to vector<8x128xf32>
    %175 = arith.mulf %174, %173 : vector<8x128xf32>
    %176 = vector.broadcast %3 : f32 to vector<8x128xf32>
    %177 = arith.addf %175, %176 : vector<8x128xf32>
    %178 = arith.index_cast %c7_i32 : i32 to index
    %c0_34 = arith.constant 0 : index
    %c0_35 = arith.constant 0 : index
    %179 = vector.load %arg4[%178, %c0_34, %c0_35] : memref<8x8x128xf32, #tpu.memory_space<vmem>>, vector<1x8x128xf32>
    %180 = vector.shape_cast %179 : vector<1x8x128xf32> to vector<8x128xf32>
    %181 = vector.shape_cast %177 : vector<8x128xf32> to vector<1x8x128xf32>
    tpu.vector_store %arg4[%178, %c0_34, %c0_35], %181 {strides = array<i32>} : memref<8x8x128xf32, #tpu.memory_space<vmem>>, vector<1x8x128xf32>,
    %182 = arith.subf %166, %173 : vector<8x128xf32>
    %183 = vector.broadcast %4 : f32 to vector<8x128xf32>
    %184 = arith.mulf %183, %182 : vector<8x128xf32>
    %c8_i32 = arith.constant 8 : i32
    %c0_36 = arith.constant 0 : index
    %c0_37 = arith.constant 0 : index
    %185 = vector.load %arg5[%c0_36, %c0_37] : memref<8x128xf32, #tpu.memory_space<vmem>>, vector<8x128xf32>
    tpu.vector_store %arg5[%c0_36, %c0_37], %184 {strides = array<i32>} : memref<8x128xf32, #tpu.memory_space<vmem>>, vector<8x128xf32>,
    return
  }
  func.func @transform_0(%arg0: i32, %arg1: i32) -> i32 {
    %c0_i32 = arith.constant 0 : i32
    %c0_i32_0 = arith.constant 0 : i32
    return %c0_i32 : i32
  }
  func.func @transform_1(%arg0: i32, %arg1: i32) -> (i32, i32, i32) {
    %c0_i32 = arith.constant 0 : i32
    %c0_i32_0 = arith.constant 0 : i32
    return %arg1, %c0_i32, %arg0 : i32, i32, i32
  }
  func.func @transform_2(%arg0: i32, %arg1: i32) -> (i32, i32, i32) {
    %c0_i32 = arith.constant 0 : i32
    %c0_i32_0 = arith.constant 0 : i32
    return %arg1, %c0_i32, %arg0 : i32, i32, i32
  }
}

</mosaic_0001>

<llo_original>
// kernel: neural_adder.1
$region0: #{neural_adder.1}
  #allocation0 [shape = 'u32[]', space=smem, size = 0x4, offset = 0x4, fixed_abs, tag = 'smem constant byte address 0x4 - core index']
  #allocation1 [shape = 'u32[144,128]{1,0:T(1,128)}', space=vmem, size = 0x12000, scoped, tag = 'internal scratch']
  #allocation2 [shape = 'f32[8,128]{1,0:T(8,128)}', space=vmem, size = 0x1000, scoped, tag = 'scratch operand']
  %s0 = inlined_call_operand.vmem [shape: f32[5], index: 0, kind: input, shape index: {}]
  %s1 = inlined_call_operand.vmem [shape: f32[8,8,128], index: 1, kind: input, shape index: {}]
  %s2 = inlined_call_operand.vmem [shape: f32[8,8,128], index: 2, kind: output, shape index: {}]
  %s3 = sld [smem:[#allocation0]]
  $region26: #{neural_adder.1} parent=0
    _
  %s5 = ssub.s32 1, %s3
  %s6 = scalar_select 0, %s5, %s3
  $region1: #{neural_adder.1} parent=0
    #allocation3 [shape = 'u8[512]{0}', space=smem, size = 0x200, scoped, tag = 'input window, operand 0, single buffered']
    #allocation4 [shape = 's32[1]{0}', space=sflag, size = 0x4, scoped, tag = 'scoped memory for neural_adder.1']
    %7 = vsyncpa [#allocation4], 0
    // Predicated region
    $region2: #{neural_adder.1} parent=1 // pred_check
      _
    $region3: #{neural_adder.1} parent=1 // pred_check_branch
      %9 = sbr.rel (0) target = $region5
    $region4: #{neural_adder.1} parent=1 // pred_region
      %s11 = ssub.s32 16, 16
      %12 = vsyncadd [#allocation4], %s11
      %s14 = sshll.u32 %s0, 4
      %s15 = int_to_ptr.vmem [resolvable:$true] %s14
      %17 = dma.vmem_to_smem %s15, 16, [#allocation3], [#allocation4]
    $region5: #{neural_adder.1} parent=1 // pred_fallthru
      _
    // Predicated region
    $region6: #{neural_adder.1} parent=1 // pred_check
      _
    $region7: #{neural_adder.1} parent=1 // pred_check_branch
      %19 = sbr.rel (0) target = $region9
    $region8: #{neural_adder.1} parent=1 // pred_region
      _
    $region9: #{neural_adder.1} parent=1 // pred_fallthru
      _
    // Predicated region
    $region10: #{neural_adder.1} parent=1 // pred_check
      _
    $region11: #{neural_adder.1} parent=1 // pred_check_branch
      %21 = sbr.rel (0) target = $region13
    $region12: #{neural_adder.1} parent=1 // pred_region
      %22 = dma.done [#allocation4], 16
    $region13: #{neural_adder.1} parent=1 // pred_fallthru
      _
    %23 = sfence
    %s24 = sld [smem:[#allocation3]]
    %s25 = sld [smem:[#allocation3 + $0x1]]
    %s26 = sld [smem:[#allocation3 + $0x2]]
    %s27 = sld [smem:[#allocation3 + $0x3]]
    %s28 = sld [smem:[#allocation3 + $0x4]]
    %p29 = scmp.eq.s32.totalorder 0, 0
    // Predicated region
    $region14: #{neural_adder.1} parent=1 // pred_check
      %p30 = pneg %p29
    $region15: #{neural_adder.1} parent=1 // pred_check_branch
      %32 = sbr.rel (%p30) target = $region17
    $region16: #{neural_adder.1} parent=1 // pred_region
      %33 = vst [vmem:[#allocation2] sm:$0xff] 0.0
    $region17: #{neural_adder.1} parent=1 // pred_fallthru
      _
    %v34 = vld [vmem:[#allocation2] sm:$0xff]
    %v35 = vld [vmem:[%s1] sm:$0xff]
    %v36 = vadd.f32 %v35, %v34
    %v37 = vmul.f32 %v36, 3.1415927
    %v38 = vand.u32 2147483647, %v37
    %vm39 = vcmp.le.f32.partialorder %v38, 0.7853982
    %vm40 = vcmp.lt.s32.totalorder %v37, 0
    %v41 = vand.u32 %v37, 2139095040
    %v42 = vshrl.u32 %v41, 23
    %v43 = vsub.s32 %v42, 127
    %v44 = vand.u32 2147483647, %v37
    %v45 = vand.u32 %v44, 8388607
    %v46 = vor.u32 %v45, 8388608
    %v47 = vsub.s32 0, %v46
    %v48 = vadd.s32 %v43, 1
    %vm49 = vcmp.gt.s32.totalorder %v48, 0
    %v50 = vsel %vm49, %v48, 0
    %v51 = vshrl.u32 %v50, 5
    %v52 = vand.u32 %v50, 31
    %v53 = vsub.s32 32, %v52
    %v54 = vshrl.u32 683565275, %v53
    %v55 = vshll.u32 683565275, %v52
    %v56 = vshrl.u32 2475754826, %v53
    %v57 = vor.u32 %v55, %v56
    %v58 = vshll.u32 2475754826, %v52
    %v59 = vshrl.u32 2131351028, %v53
    %v60 = vor.u32 %v58, %v59
    %v61 = vshll.u32 2131351028, %v52
    %v62 = vshrl.u32 2102212464, %v53
    %v63 = vor.u32 %v61, %v62
    %v64 = vshll.u32 2102212464, %v52
    %v65 = vshrl.u32 920167782, %v53
    %v66 = vor.u32 %v64, %v65
    %v67 = vshll.u32 920167782, %v52
    %v68 = vshrl.u32 1326507024, %v53
    %v69 = vor.u32 %v67, %v68
    %vm70 = vcmp.lt.s32.totalorder %v51, 1
    %vm71 = vcmp.lt.s32.totalorder %v51, 2
    %vm72 = vcmp.lt.s32.totalorder %v51, 3
    %vm73 = vcmp.lt.s32.totalorder %v51, 4
    %v74 = vsel %vm70, %v54, %v57
    %v75 = vsel %vm73, %v63, 2102212464
    %v76 = vsel %vm72, %v60, %v75
    %v77 = vsel %vm71, %v74, %v76
    %v78 = vsel %vm70, %v57, %v60
    %v79 = vsel %vm73, %v66, 920167782
    %v80 = vsel %vm72, %v63, %v79
    %v81 = vsel %vm71, %v78, %v80
    %v82 = vsel %vm70, %v60, %v63
    %v83 = vsel %vm73, %v69, 1326507024
    %v84 = vsel %vm72, %v66, %v83
    %v85 = vsel %vm71, %v82, %v84
    %v86 = vshll.u32 %v46, 8
    %v87 = vmul.u32.u64.compose %v86, %v85
    %v88 = vextract.low.u32 %v87
    %v89 = vextract.high.u32 %v87
    %v90 = vmul.u32.u64.compose %v86, %v81
    %v91 = vextract.low.u32 %v90
    %v92 = vextract.high.u32 %v90
    %v93 = vmul.u32 %v86, %v77
    %v94 = vadd.s32 %v89, %v91
    %vm95 = vc.u32 %v89, %v91
    %v96 = vadd.s32 %v92, 1
    %v97 = vsel %vm95, %v96, %v92
    %v98 = vadd.s32 %v93, %v97
    %v99 = vadd.s32 %v98, 536870912
    %v100 = vshrl.u32 %v99, 30
    %v101 = vshll.u32 %v100, 30
    %v102 = vsub.s32 %v98, %v101
    %vm103 = vcmp.lt.s32.totalorder %v102, 0
    %v104 = vsub.s32 0, %v102
    %v105 = vsel %vm103, %v104, %v102
    %v106 = vclz %v105
    %v107 = vsub.s32 %v106, 2
    %vm108 = vcmp.gt.s32.totalorder 0, %v107
    %v109 = vsel %vm108, 0, %v107
    %v110 = vsub.s32 32, %v109
    %v111 = vshll.u32 %v102, %v109
    %v112 = vshrl.u32 %v94, %v110
    %v113 = vor.u32 %v111, %v112
    %v114 = vsub.s32 4294967266, %v109
    %v115 = vadd.s32 %v114, 127
    %v116 = vshll.u32 %v115, 23
    %v117 = vor.u32 4788187, %v116
    %v118 = vand.u32 2147483647, %v117
    %v120 = vcvt.s32.f32 %v113
    %v121 = vmul.f32 %v120, %v118
    %v122 = vxor.u32 %v121, 2147483648
    %v123 = vsel %vm40, %v122, %v121
    %v124 = vsub.s32 4, %v100
    %v125 = vsel %vm40, %v124, %v100
    %v126 = vsel %vm39, %v37, %v123
    %v127 = vsel %vm39, 0, %v125
    %v128 = vcosq.f32.pop %v126
    %v129 = vsinq.f32.pop %v126
    %vm130 = vweird.f32 %v37
    %v131 = vand.u32 %v127, 3
    %vm132 = vcmp.lt.s32.totalorder %v131, 2
    %vm133 = vcmp.eq.s32.totalorder %v131, 0
    %v134 = vxor.u32 %v129, 2147483648
    %v135 = vsel %vm133, %v128, %v134
    %vm136 = vcmp.eq.s32.totalorder %v131, 2
    %v137 = vxor.u32 %v128, 2147483648
    %v138 = vsel %vm136, %v137, %v129
    %v139 = vsel %vm132, %v135, %v138
    %v140 = vsel %vm130, nan, %v139
    %v141 = vstv %s24
    %v142 = vmul.f32 %v141, %v140
    %v143 = vstv %s25
    %v144 = vadd.f32 %v142, %v143
    %v145 = vstv %s26
    %v146 = vmul.f32 %v145, %v144
    %v147 = vstv %s27
    %v148 = vadd.f32 %v146, %v147
    %149 = vst [vmem:[%s2] sm:$0xff] %v148
    %v150 = vsub.f32 %v36, %v144
    %v151 = vstv %s28
    %v152 = vmul.f32 %v151, %v150
    %s153 = scalar_lea.vmem %s1, 8
    %v154 = vld [vmem:[%s153] sm:$0xff]
    %v155 = vadd.f32 %v154, %v152
    %v156 = vmul.f32 %v155, 3.1415927
    %v157 = vand.u32 2147483647, %v156
    %vm158 = vcmp.le.f32.partialorder %v157, 0.7853982
    %vm159 = vcmp.lt.s32.totalorder %v156, 0
    %v160 = vand.u32 %v156, 2139095040
    %v161 = vshrl.u32 %v160, 23
    %v162 = vsub.s32 %v161, 127
    %v163 = vand.u32 2147483647, %v156
    %v164 = vand.u32 %v163, 8388607
    %v165 = vor.u32 %v164, 8388608
    %v166 = vsub.s32 0, %v165
    %v167 = vadd.s32 %v162, 1
    %vm168 = vcmp.gt.s32.totalorder %v167, 0
    %v169 = vsel %vm168, %v167, 0
    %v170 = vshrl.u32 %v169, 5
    %v171 = vand.u32 %v169, 31
    %v172 = vsub.s32 32, %v171
    %v173 = vshrl.u32 683565275, %v172
    %v174 = vshll.u32 683565275, %v171
    %v175 = vshrl.u32 2475754826, %v172
    %v176 = vor.u32 %v174, %v175
    %v177 = vshll.u32 2475754826, %v171
    %v178 = vshrl.u32 2131351028, %v172
    %v179 = vor.u32 %v177, %v178
    %v180 = vshll.u32 2131351028, %v171
    %v181 = vshrl.u32 2102212464, %v172
    %v182 = vor.u32 %v180, %v181
    %v183 = vshll.u32 2102212464, %v171
    %v184 = vshrl.u32 920167782, %v172
    %v185 = vor.u32 %v183, %v184
    %v186 = vshll.u32 920167782, %v171
    %v187 = vshrl.u32 1326507024, %v172
    %v188 = vor.u32 %v186, %v187
    %vm189 = vcmp.lt.s32.totalorder %v170, 1
    %vm190 = vcmp.lt.s32.totalorder %v170, 2
    %vm191 = vcmp.lt.s32.totalorder %v170, 3
    %vm192 = vcmp.lt.s32.totalorder %v170, 4
    %v193 = vsel %vm189, %v173, %v176
    %v194 = vsel %vm192, %v182, 2102212464
    %v195 = vsel %vm191, %v179, %v194
    %v196 = vsel %vm190, %v193, %v195
    %v197 = vsel %vm189, %v176, %v179
    %v198 = vsel %vm192, %v185, 920167782
    %v199 = vsel %vm191, %v182, %v198
    %v200 = vsel %vm190, %v197, %v199
    %v201 = vsel %vm189, %v179, %v182
    %v202 = vsel %vm192, %v188, 1326507024
    %v203 = vsel %vm191, %v185, %v202
    %v204 = vsel %vm190, %v201, %v203
    %v205 = vshll.u32 %v165, 8
    %v206 = vmul.u32.u64.compose %v205, %v204
    %v207 = vextract.low.u32 %v206
    %v208 = vextract.high.u32 %v206
    %v209 = vmul.u32.u64.compose %v205, %v200
    %v210 = vextract.low.u32 %v209
    %v211 = vextract.high.u32 %v209
    %v212 = vmul.u32 %v205, %v196
    %v213 = vadd.s32 %v208, %v210
    %vm214 = vc.u32 %v208, %v210
    %v215 = vadd.s32 %v211, 1
    %v216 = vsel %vm214, %v215, %v211
    %v217 = vadd.s32 %v212, %v216
    %v218 = vadd.s32 %v217, 536870912
    %v219 = vshrl.u32 %v218, 30
    %v220 = vshll.u32 %v219, 30
    %v221 = vsub.s32 %v217, %v220
    %vm222 = vcmp.lt.s32.totalorder %v221, 0
    %v223 = vsub.s32 0, %v221
    %v224 = vsel %vm222, %v223, %v221
    %v225 = vclz %v224
    %v226 = vsub.s32 %v225, 2
    %vm227 = vcmp.gt.s32.totalorder 0, %v226
    %v228 = vsel %vm227, 0, %v226
    %v229 = vsub.s32 32, %v228
    %v230 = vshll.u32 %v221, %v228
    %v231 = vshrl.u32 %v213, %v229
    %v232 = vor.u32 %v230, %v231
    %v233 = vsub.s32 4294967266, %v228
    %v234 = vadd.s32 %v233, 127
    %v235 = vshll.u32 %v234, 23
    %v236 = vor.u32 4788187, %v235
    %v237 = vand.u32 2147483647, %v236
    %v239 = vcvt.s32.f32 %v232
    %v240 = vmul.f32 %v239, %v237
    %v241 = vxor.u32 %v240, 2147483648
    %v242 = vsel %vm159, %v241, %v240
    %v243 = vsub.s32 4, %v219
    %v244 = vsel %vm159, %v243, %v219
    %v245 = vsel %vm158, %v156, %v242
    %v246 = vsel %vm158, 0, %v244
    %v247 = vcosq.f32.pop %v245
    %v248 = vsinq.f32.pop %v245
    %vm249 = vweird.f32 %v156
    %v250 = vand.u32 %v246, 3
    %vm251 = vcmp.lt.s32.totalorder %v250, 2
    %vm252 = vcmp.eq.s32.totalorder %v250, 0
    %v253 = vxor.u32 %v248, 2147483648
    %v254 = vsel %vm252, %v247, %v253
    %vm255 = vcmp.eq.s32.totalorder %v250, 2
    %v256 = vxor.u32 %v247, 2147483648
    %v257 = vsel %vm255, %v256, %v248
    %v258 = vsel %vm251, %v254, %v257
    %v259 = vsel %vm249, nan, %v258
    %v260 = vmul.f32 %v141, %v259
    %v261 = vadd.f32 %v260, %v143
    %v262 = vmul.f32 %v145, %v261
    %v263 = vadd.f32 %v262, %v147
    %s264 = scalar_lea.vmem %s2, 8
    %265 = vst [vmem:[%s264] sm:$0xff] %v263
    %v266 = vsub.f32 %v155, %v261
    %v267 = vmul.f32 %v151, %v266
    %s268 = scalar_lea.vmem %s1, 16
    %v269 = vld [vmem:[%s268] sm:$0xff]
    %v270 = vadd.f32 %v269, %v267
    %v271 = vmul.f32 %v270, 3.1415927
    %v272 = vand.u32 2147483647, %v271
    %vm273 = vcmp.le.f32.partialorder %v272, 0.7853982
    %vm274 = vcmp.lt.s32.totalorder %v271, 0
    %v275 = vand.u32 %v271, 2139095040
    %v276 = vshrl.u32 %v275, 23
    %v277 = vsub.s32 %v276, 127
    %v278 = vand.u32 2147483647, %v271
    %v279 = vand.u32 %v278, 8388607
    %v280 = vor.u32 %v279, 8388608
    %v281 = vsub.s32 0, %v280
    %v282 = vadd.s32 %v277, 1
    %vm283 = vcmp.gt.s32.totalorder %v282, 0
    %v284 = vsel %vm283, %v282, 0
    %v285 = vshrl.u32 %v284, 5
    %v286 = vand.u32 %v284, 31
    %v287 = vsub.s32 32, %v286
    %v288 = vshrl.u32 683565275, %v287
    %v289 = vshll.u32 683565275, %v286
    %v290 = vshrl.u32 2475754826, %v287
    %v291 = vor.u32 %v289, %v290
    %v292 = vshll.u32 2475754826, %v286
    %v293 = vshrl.u32 2131351028, %v287
    %v294 = vor.u32 %v292, %v293
    %v295 = vshll.u32 2131351028, %v286
    %v296 = vshrl.u32 2102212464, %v287
    %v297 = vor.u32 %v295, %v296
    %v298 = vshll.u32 2102212464, %v286
    %v299 = vshrl.u32 920167782, %v287
    %v300 = vor.u32 %v298, %v299
    %v301 = vshll.u32 920167782, %v286
    %v302 = vshrl.u32 1326507024, %v287
    %v303 = vor.u32 %v301, %v302
    %vm304 = vcmp.lt.s32.totalorder %v285, 1
    %vm305 = vcmp.lt.s32.totalorder %v285, 2
    %vm306 = vcmp.lt.s32.totalorder %v285, 3
    %vm307 = vcmp.lt.s32.totalorder %v285, 4
    %v308 = vsel %vm304, %v288, %v291
    %v309 = vsel %vm307, %v297, 2102212464
    %v310 = vsel %vm306, %v294, %v309
    %v311 = vsel %vm305, %v308, %v310
    %v312 = vsel %vm304, %v291, %v294
    %v313 = vsel %vm307, %v300, 920167782
    %v314 = vsel %vm306, %v297, %v313
    %v315 = vsel %vm305, %v312, %v314
    %v316 = vsel %vm304, %v294, %v297
    %v317 = vsel %vm307, %v303, 1326507024
    %v318 = vsel %vm306, %v300, %v317
    %v319 = vsel %vm305, %v316, %v318
    %v320 = vshll.u32 %v280, 8
    %v321 = vmul.u32.u64.compose %v320, %v319
    %v322 = vextract.low.u32 %v321
    %v323 = vextract.high.u32 %v321
    %v324 = vmul.u32.u64.compose %v320, %v315
    %v325 = vextract.low.u32 %v324
    %v326 = vextract.high.u32 %v324
    %v327 = vmul.u32 %v320, %v311
    %v328 = vadd.s32 %v323, %v325
    %vm329 = vc.u32 %v323, %v325
    %v330 = vadd.s32 %v326, 1
    %v331 = vsel %vm329, %v330, %v326
    %v332 = vadd.s32 %v327, %v331
    %v333 = vadd.s32 %v332, 536870912
    %v334 = vshrl.u32 %v333, 30
    %v335 = vshll.u32 %v334, 30
    %v336 = vsub.s32 %v332, %v335
    %vm337 = vcmp.lt.s32.totalorder %v336, 0
    %v338 = vsub.s32 0, %v336
    %v339 = vsel %vm337, %v338, %v336
    %v340 = vclz %v339
    %v341 = vsub.s32 %v340, 2
    %vm342 = vcmp.gt.s32.totalorder 0, %v341
    %v343 = vsel %vm342, 0, %v341
    %v344 = vsub.s32 32, %v343
    %v345 = vshll.u32 %v336, %v343
    %v346 = vshrl.u32 %v328, %v344
    %v347 = vor.u32 %v345, %v346
    %v348 = vsub.s32 4294967266, %v343
    %v349 = vadd.s32 %v348, 127
    %v350 = vshll.u32 %v349, 23
    %v351 = vor.u32 4788187, %v350
    %v352 = vand.u32 2147483647, %v351
    %v354 = vcvt.s32.f32 %v347
    %v355 = vmul.f32 %v354, %v352
    %v356 = vxor.u32 %v355, 2147483648
    %v357 = vsel %vm274, %v356, %v355
    %v358 = vsub.s32 4, %v334
    %v359 = vsel %vm274, %v358, %v334
    %v360 = vsel %vm273, %v271, %v357
    %v361 = vsel %vm273, 0, %v359
    %v362 = vcosq.f32.pop %v360
    %v363 = vsinq.f32.pop %v360
    %vm364 = vweird.f32 %v271
    %v365 = vand.u32 %v361, 3
    %vm366 = vcmp.lt.s32.totalorder %v365, 2
    %vm367 = vcmp.eq.s32.totalorder %v365, 0
    %v368 = vxor.u32 %v363, 2147483648
    %v369 = vsel %vm367, %v362, %v368
    %vm370 = vcmp.eq.s32.totalorder %v365, 2
    %v371 = vxor.u32 %v362, 2147483648
    %v372 = vsel %vm370, %v371, %v363
    %v373 = vsel %vm366, %v369, %v372
    %v374 = vsel %vm364, nan, %v373
    %v375 = vmul.f32 %v141, %v374
    %v376 = vadd.f32 %v375, %v143
    %v377 = vmul.f32 %v145, %v376
    %v378 = vadd.f32 %v377, %v147
    %s379 = scalar_lea.vmem %s2, 16
    %380 = vst [vmem:[%s379] sm:$0xff] %v378
    %v381 = vsub.f32 %v270, %v376
    %v382 = vmul.f32 %v151, %v381
    %s383 = scalar_lea.vmem %s1, 24
    %v384 = vld [vmem:[%s383] sm:$0xff]
    %v385 = vadd.f32 %v384, %v382
    %v386 = vmul.f32 %v385, 3.1415927
    %v387 = vand.u32 2147483647, %v386
    %vm388 = vcmp.le.f32.partialorder %v387, 0.7853982
    %vm389 = vcmp.lt.s32.totalorder %v386, 0
    %v390 = vand.u32 %v386, 2139095040
    %v391 = vshrl.u32 %v390, 23
    %v392 = vsub.s32 %v391, 127
    %v393 = vand.u32 2147483647, %v386
    %v394 = vand.u32 %v393, 8388607
    %v395 = vor.u32 %v394, 8388608
    %v396 = vsub.s32 0, %v395
    %v397 = vadd.s32 %v392, 1
    %vm398 = vcmp.gt.s32.totalorder %v397, 0
    %v399 = vsel %vm398, %v397, 0
    %v400 = vshrl.u32 %v399, 5
    %v401 = vand.u32 %v399, 31
    %v402 = vsub.s32 32, %v401
    %v403 = vshrl.u32 683565275, %v402
    %v404 = vshll.u32 683565275, %v401
    %v405 = vshrl.u32 2475754826, %v402
    %v406 = vor.u32 %v404, %v405
    %v407 = vshll.u32 2475754826, %v401
    %v408 = vshrl.u32 2131351028, %v402
    %v409 = vor.u32 %v407, %v408
    %v410 = vshll.u32 2131351028, %v401
    %v411 = vshrl.u32 2102212464, %v402
    %v412 = vor.u32 %v410, %v411
    %v413 = vshll.u32 2102212464, %v401
    %v414 = vshrl.u32 920167782, %v402
    %v415 = vor.u32 %v413, %v414
    %v416 = vshll.u32 920167782, %v401
    %v417 = vshrl.u32 1326507024, %v402
    %v418 = vor.u32 %v416, %v417
    %vm419 = vcmp.lt.s32.totalorder %v400, 1
    %vm420 = vcmp.lt.s32.totalorder %v400, 2
    %vm421 = vcmp.lt.s32.totalorder %v400, 3
    %vm422 = vcmp.lt.s32.totalorder %v400, 4
    %v423 = vsel %vm419, %v403, %v406
    %v424 = vsel %vm422, %v412, 2102212464
    %v425 = vsel %vm421, %v409, %v424
    %v426 = vsel %vm420, %v423, %v425
    %v427 = vsel %vm419, %v406, %v409
    %v428 = vsel %vm422, %v415, 920167782
    %v429 = vsel %vm421, %v412, %v428
    %v430 = vsel %vm420, %v427, %v429
    %v431 = vsel %vm419, %v409, %v412
    %v432 = vsel %vm422, %v418, 1326507024
    %v433 = vsel %vm421, %v415, %v432
    %v434 = vsel %vm420, %v431, %v433
    %v435 = vshll.u32 %v395, 8
    %v436 = vmul.u32.u64.compose %v435, %v434
    %v437 = vextract.low.u32 %v436
    %v438 = vextract.high.u32 %v436
    %v439 = vmul.u32.u64.compose %v435, %v430
    %v440 = vextract.low.u32 %v439
    %v441 = vextract.high.u32 %v439
    %v442 = vmul.u32 %v435, %v426
    %v443 = vadd.s32 %v438, %v440
    %vm444 = vc.u32 %v438, %v440
    %v445 = vadd.s32 %v441, 1
    %v446 = vsel %vm444, %v445, %v441
    %v447 = vadd.s32 %v442, %v446
    %v448 = vadd.s32 %v447, 536870912
    %v449 = vshrl.u32 %v448, 30
    %v450 = vshll.u32 %v449, 30
    %v451 = vsub.s32 %v447, %v450
    %vm452 = vcmp.lt.s32.totalorder %v451, 0
    %v453 = vsub.s32 0, %v451
    %v454 = vsel %vm452, %v453, %v451
    %v455 = vclz %v454
    %v456 = vsub.s32 %v455, 2
    %vm457 = vcmp.gt.s32.totalorder 0, %v456
    %v458 = vsel %vm457, 0, %v456
    %v459 = vsub.s32 32, %v458
    %v460 = vshll.u32 %v451, %v458
    %v461 = vshrl.u32 %v443, %v459
    %v462 = vor.u32 %v460, %v461
    %v463 = vsub.s32 4294967266, %v458
    %v464 = vadd.s32 %v463, 127
    %v465 = vshll.u32 %v464, 23
    %v466 = vor.u32 4788187, %v465
    %v467 = vand.u32 2147483647, %v466
    %v469 = vcvt.s32.f32 %v462
    %v470 = vmul.f32 %v469, %v467
    %v471 = vxor.u32 %v470, 2147483648
    %v472 = vsel %vm389, %v471, %v470
    %v473 = vsub.s32 4, %v449
    %v474 = vsel %vm389, %v473, %v449
    %v475 = vsel %vm388, %v386, %v472
    %v476 = vsel %vm388, 0, %v474
    %v477 = vcosq.f32.pop %v475
    %v478 = vsinq.f32.pop %v475
    %vm479 = vweird.f32 %v386
    %v480 = vand.u32 %v476, 3
    %vm481 = vcmp.lt.s32.totalorder %v480, 2
    %vm482 = vcmp.eq.s32.totalorder %v480, 0
    %v483 = vxor.u32 %v478, 2147483648
    %v484 = vsel %vm482, %v477, %v483
    %vm485 = vcmp.eq.s32.totalorder %v480, 2
    %v486 = vxor.u32 %v477, 2147483648
    %v487 = vsel %vm485, %v486, %v478
    %v488 = vsel %vm481, %v484, %v487
    %v489 = vsel %vm479, nan, %v488
    %v490 = vmul.f32 %v141, %v489
    %v491 = vadd.f32 %v490, %v143
    %v492 = vmul.f32 %v145, %v491
    %v493 = vadd.f32 %v492, %v147
    %s494 = scalar_lea.vmem %s2, 24
    %495 = vst [vmem:[%s494] sm:$0xff] %v493
    %v496 = vsub.f32 %v385, %v491
    %v497 = vmul.f32 %v151, %v496
    %s498 = scalar_lea.vmem %s1, 32
    %v499 = vld [vmem:[%s498] sm:$0xff]
    %v500 = vadd.f32 %v499, %v497
    %v501 = vmul.f32 %v500, 3.1415927
    %v502 = vand.u32 2147483647, %v501
    %vm503 = vcmp.le.f32.partialorder %v502, 0.7853982
    %vm504 = vcmp.lt.s32.totalorder %v501, 0
    %v505 = vand.u32 %v501, 2139095040
    %v506 = vshrl.u32 %v505, 23
    %v507 = vsub.s32 %v506, 127
    %v508 = vand.u32 2147483647, %v501
    %v509 = vand.u32 %v508, 8388607
    %v510 = vor.u32 %v509, 8388608
    %v511 = vsub.s32 0, %v510
    %v512 = vadd.s32 %v507, 1
    %vm513 = vcmp.gt.s32.totalorder %v512, 0
    %v514 = vsel %vm513, %v512, 0
    %v515 = vshrl.u32 %v514, 5
    %v516 = vand.u32 %v514, 31
    %v517 = vsub.s32 32, %v516
    %v518 = vshrl.u32 683565275, %v517
    %v519 = vshll.u32 683565275, %v516
    %v520 = vshrl.u32 2475754826, %v517
    %v521 = vor.u32 %v519, %v520
    %v522 = vshll.u32 2475754826, %v516
    %v523 = vshrl.u32 2131351028, %v517
    %v524 = vor.u32 %v522, %v523
    %v525 = vshll.u32 2131351028, %v516
    %v526 = vshrl.u32 2102212464, %v517
    %v527 = vor.u32 %v525, %v526
    %v528 = vshll.u32 2102212464, %v516
    %v529 = vshrl.u32 920167782, %v517
    %v530 = vor.u32 %v528, %v529
    %v531 = vshll.u32 920167782, %v516
    %v532 = vshrl.u32 1326507024, %v517
    %v533 = vor.u32 %v531, %v532
    %vm534 = vcmp.lt.s32.totalorder %v515, 1
    %vm535 = vcmp.lt.s32.totalorder %v515, 2
    %vm536 = vcmp.lt.s32.totalorder %v515, 3
    %vm537 = vcmp.lt.s32.totalorder %v515, 4
    %v538 = vsel %vm534, %v518, %v521
    %v539 = vsel %vm537, %v527, 2102212464
    %v540 = vsel %vm536, %v524, %v539
    %v541 = vsel %vm535, %v538, %v540
    %v542 = vsel %vm534, %v521, %v524
    %v543 = vsel %vm537, %v530, 920167782
    %v544 = vsel %vm536, %v527, %v543
    %v545 = vsel %vm535, %v542, %v544
    %v546 = vsel %vm534, %v524, %v527
    %v547 = vsel %vm537, %v533, 1326507024
    %v548 = vsel %vm536, %v530, %v547
    %v549 = vsel %vm535, %v546, %v548
    %v550 = vshll.u32 %v510, 8
    %v551 = vmul.u32.u64.compose %v550, %v549
    %v552 = vextract.low.u32 %v551
    %v553 = vextract.high.u32 %v551
    %v554 = vmul.u32.u64.compose %v550, %v545
    %v555 = vextract.low.u32 %v554
    %v556 = vextract.high.u32 %v554
    %v557 = vmul.u32 %v550, %v541
    %v558 = vadd.s32 %v553, %v555
    %vm559 = vc.u32 %v553, %v555
    %v560 = vadd.s32 %v556, 1
    %v561 = vsel %vm559, %v560, %v556
    %v562 = vadd.s32 %v557, %v561
    %v563 = vadd.s32 %v562, 536870912
    %v564 = vshrl.u32 %v563, 30
    %v565 = vshll.u32 %v564, 30
    %v566 = vsub.s32 %v562, %v565
    %vm567 = vcmp.lt.s32.totalorder %v566, 0
    %v568 = vsub.s32 0, %v566
    %v569 = vsel %vm567, %v568, %v566
    %v570 = vclz %v569
    %v571 = vsub.s32 %v570, 2
    %vm572 = vcmp.gt.s32.totalorder 0, %v571
    %v573 = vsel %vm572, 0, %v571
    %v574 = vsub.s32 32, %v573
    %v575 = vshll.u32 %v566, %v573
    %v576 = vshrl.u32 %v558, %v574
    %v577 = vor.u32 %v575, %v576
    %v578 = vsub.s32 4294967266, %v573
    %v579 = vadd.s32 %v578, 127
    %v580 = vshll.u32 %v579, 23
    %v581 = vor.u32 4788187, %v580
    %v582 = vand.u32 2147483647, %v581
    %v584 = vcvt.s32.f32 %v577
    %v585 = vmul.f32 %v584, %v582
    %v586 = vxor.u32 %v585, 2147483648
    %v587 = vsel %vm504, %v586, %v585
    %v588 = vsub.s32 4, %v564
    %v589 = vsel %vm504, %v588, %v564
    %v590 = vsel %vm503, %v501, %v587
    %v591 = vsel %vm503, 0, %v589
    %v592 = vcosq.f32.pop %v590
    %v593 = vsinq.f32.pop %v590
    %vm594 = vweird.f32 %v501
    %v595 = vand.u32 %v591, 3
    %vm596 = vcmp.lt.s32.totalorder %v595, 2
    %vm597 = vcmp.eq.s32.totalorder %v595, 0
    %v598 = vxor.u32 %v593, 2147483648
    %v599 = vsel %vm597, %v592, %v598
    %vm600 = vcmp.eq.s32.totalorder %v595, 2
    %v601 = vxor.u32 %v592, 2147483648
    %v602 = vsel %vm600, %v601, %v593
    %v603 = vsel %vm596, %v599, %v602
    %v604 = vsel %vm594, nan, %v603
    %v605 = vmul.f32 %v141, %v604
    %v606 = vadd.f32 %v605, %v143
    %v607 = vmul.f32 %v145, %v606
    %v608 = vadd.f32 %v607, %v147
    %s609 = scalar_lea.vmem %s2, 32
    %610 = vst [vmem:[%s609] sm:$0xff] %v608
    %v611 = vsub.f32 %v500, %v606
    %v612 = vmul.f32 %v151, %v611
    %s613 = scalar_lea.vmem %s1, 40
    %v614 = vld [vmem:[%s613] sm:$0xff]
    %v615 = vadd.f32 %v614, %v612
    %v616 = vmul.f32 %v615, 3.1415927
    %v617 = vand.u32 2147483647, %v616
    %vm618 = vcmp.le.f32.partialorder %v617, 0.7853982
    %vm619 = vcmp.lt.s32.totalorder %v616, 0
    %v620 = vand.u32 %v616, 2139095040
    %v621 = vshrl.u32 %v620, 23
    %v622 = vsub.s32 %v621, 127
    %v623 = vand.u32 2147483647, %v616
    %v624 = vand.u32 %v623, 8388607
    %v625 = vor.u32 %v624, 8388608
    %v626 = vsub.s32 0, %v625
    %v627 = vadd.s32 %v622, 1
    %vm628 = vcmp.gt.s32.totalorder %v627, 0
    %v629 = vsel %vm628, %v627, 0
    %v630 = vshrl.u32 %v629, 5
    %v631 = vand.u32 %v629, 31
    %v632 = vsub.s32 32, %v631
    %v633 = vshrl.u32 683565275, %v632
    %v634 = vshll.u32 683565275, %v631
    %v635 = vshrl.u32 2475754826, %v632
    %v636 = vor.u32 %v634, %v635
    %v637 = vshll.u32 2475754826, %v631
    %v638 = vshrl.u32 2131351028, %v632
    %v639 = vor.u32 %v637, %v638
    %v640 = vshll.u32 2131351028, %v631
    %v641 = vshrl.u32 2102212464, %v632
    %v642 = vor.u32 %v640, %v641
    %v643 = vshll.u32 2102212464, %v631
    %v644 = vshrl.u32 920167782, %v632
    %v645 = vor.u32 %v643, %v644
    %v646 = vshll.u32 920167782, %v631
    %v647 = vshrl.u32 1326507024, %v632
    %v648 = vor.u32 %v646, %v647
    %vm649 = vcmp.lt.s32.totalorder %v630, 1
    %vm650 = vcmp.lt.s32.totalorder %v630, 2
    %vm651 = vcmp.lt.s32.totalorder %v630, 3
    %vm652 = vcmp.lt.s32.totalorder %v630, 4
    %v653 = vsel %vm649, %v633, %v636
    %v654 = vsel %vm652, %v642, 2102212464
    %v655 = vsel %vm651, %v639, %v654
    %v656 = vsel %vm650, %v653, %v655
    %v657 = vsel %vm649, %v636, %v639
    %v658 = vsel %vm652, %v645, 920167782
    %v659 = vsel %vm651, %v642, %v658
    %v660 = vsel %vm650, %v657, %v659
    %v661 = vsel %vm649, %v639, %v642
    %v662 = vsel %vm652, %v648, 1326507024
    %v663 = vsel %vm651, %v645, %v662
    %v664 = vsel %vm650, %v661, %v663
    %v665 = vshll.u32 %v625, 8
    %v666 = vmul.u32.u64.compose %v665, %v664
    %v667 = vextract.low.u32 %v666
    %v668 = vextract.high.u32 %v666
    %v669 = vmul.u32.u64.compose %v665, %v660
    %v670 = vextract.low.u32 %v669
    %v671 = vextract.high.u32 %v669
    %v672 = vmul.u32 %v665, %v656
    %v673 = vadd.s32 %v668, %v670
    %vm674 = vc.u32 %v668, %v670
    %v675 = vadd.s32 %v671, 1
    %v676 = vsel %vm674, %v675, %v671
    %v677 = vadd.s32 %v672, %v676
    %v678 = vadd.s32 %v677, 536870912
    %v679 = vshrl.u32 %v678, 30
    %v680 = vshll.u32 %v679, 30
    %v681 = vsub.s32 %v677, %v680
    %vm682 = vcmp.lt.s32.totalorder %v681, 0
    %v683 = vsub.s32 0, %v681
    %v684 = vsel %vm682, %v683, %v681
    %v685 = vclz %v684
    %v686 = vsub.s32 %v685, 2
    %vm687 = vcmp.gt.s32.totalorder 0, %v686
    %v688 = vsel %vm687, 0, %v686
    %v689 = vsub.s32 32, %v688
    %v690 = vshll.u32 %v681, %v688
    %v691 = vshrl.u32 %v673, %v689
    %v692 = vor.u32 %v690, %v691
    %v693 = vsub.s32 4294967266, %v688
    %v694 = vadd.s32 %v693, 127
    %v695 = vshll.u32 %v694, 23
    %v696 = vor.u32 4788187, %v695
    %v697 = vand.u32 2147483647, %v696
    %v699 = vcvt.s32.f32 %v692
    %v700 = vmul.f32 %v699, %v697
    %v701 = vxor.u32 %v700, 2147483648
    %v702 = vsel %vm619, %v701, %v700
    %v703 = vsub.s32 4, %v679
    %v704 = vsel %vm619, %v703, %v679
    %v705 = vsel %vm618, %v616, %v702
    %v706 = vsel %vm618, 0, %v704
    %v707 = vcosq.f32.pop %v705
    %v708 = vsinq.f32.pop %v705
    %vm709 = vweird.f32 %v616
    %v710 = vand.u32 %v706, 3
    %vm711 = vcmp.lt.s32.totalorder %v710, 2
    %vm712 = vcmp.eq.s32.totalorder %v710, 0
    %v713 = vxor.u32 %v708, 2147483648
    %v714 = vsel %vm712, %v707, %v713
    %vm715 = vcmp.eq.s32.totalorder %v710, 2
    %v716 = vxor.u32 %v707, 2147483648
    %v717 = vsel %vm715, %v716, %v708
    %v718 = vsel %vm711, %v714, %v717
    %v719 = vsel %vm709, nan, %v718
    %v720 = vmul.f32 %v141, %v719
    %v721 = vadd.f32 %v720, %v143
    %v722 = vmul.f32 %v145, %v721
    %v723 = vadd.f32 %v722, %v147
    %s724 = scalar_lea.vmem %s2, 40
    %725 = vst [vmem:[%s724] sm:$0xff] %v723
    %v726 = vsub.f32 %v615, %v721
    %v727 = vmul.f32 %v151, %v726
    %s728 = scalar_lea.vmem %s1, 48
    %v729 = vld [vmem:[%s728] sm:$0xff]
    %v730 = vadd.f32 %v729, %v727
    %v731 = vmul.f32 %v730, 3.1415927
    %v732 = vand.u32 2147483647, %v731
    %vm733 = vcmp.le.f32.partialorder %v732, 0.7853982
    %vm734 = vcmp.lt.s32.totalorder %v731, 0
    %v735 = vand.u32 %v731, 2139095040
    %v736 = vshrl.u32 %v735, 23
    %v737 = vsub.s32 %v736, 127
    %v738 = vand.u32 2147483647, %v731
    %v739 = vand.u32 %v738, 8388607
    %v740 = vor.u32 %v739, 8388608
    %v741 = vsub.s32 0, %v740
    %v742 = vadd.s32 %v737, 1
    %vm743 = vcmp.gt.s32.totalorder %v742, 0
    %v744 = vsel %vm743, %v742, 0
    %v745 = vshrl.u32 %v744, 5
    %v746 = vand.u32 %v744, 31
    %v747 = vsub.s32 32, %v746
    %v748 = vshrl.u32 683565275, %v747
    %v749 = vshll.u32 683565275, %v746
    %v750 = vshrl.u32 2475754826, %v747
    %v751 = vor.u32 %v749, %v750
    %v752 = vshll.u32 2475754826, %v746
    %v753 = vshrl.u32 2131351028, %v747
    %v754 = vor.u32 %v752, %v753
    %v755 = vshll.u32 2131351028, %v746
    %v756 = vshrl.u32 2102212464, %v747
    %v757 = vor.u32 %v755, %v756
    %v758 = vshll.u32 2102212464, %v746
    %v759 = vshrl.u32 920167782, %v747
    %v760 = vor.u32 %v758, %v759
    %v761 = vshll.u32 920167782, %v746
    %v762 = vshrl.u32 1326507024, %v747
    %v763 = vor.u32 %v761, %v762
    %vm764 = vcmp.lt.s32.totalorder %v745, 1
    %vm765 = vcmp.lt.s32.totalorder %v745, 2
    %vm766 = vcmp.lt.s32.totalorder %v745, 3
    %vm767 = vcmp.lt.s32.totalorder %v745, 4
    %v768 = vsel %vm764, %v748, %v751
    %v769 = vsel %vm767, %v757, 2102212464
    %v770 = vsel %vm766, %v754, %v769
    %v771 = vsel %vm765, %v768, %v770
    %v772 = vsel %vm764, %v751, %v754
    %v773 = vsel %vm767, %v760, 920167782
    %v774 = vsel %vm766, %v757, %v773
    %v775 = vsel %vm765, %v772, %v774
    %v776 = vsel %vm764, %v754, %v757
    %v777 = vsel %vm767, %v763, 1326507024
    %v778 = vsel %vm766, %v760, %v777
    %v779 = vsel %vm765, %v776, %v778
    %v780 = vshll.u32 %v740, 8
    %v781 = vmul.u32.u64.compose %v780, %v779
    %v782 = vextract.low.u32 %v781
    %v783 = vextract.high.u32 %v781
    %v784 = vmul.u32.u64.compose %v780, %v775
    %v785 = vextract.low.u32 %v784
    %v786 = vextract.high.u32 %v784
    %v787 = vmul.u32 %v780, %v771
    %v788 = vadd.s32 %v783, %v785
    %vm789 = vc.u32 %v783, %v785
    %v790 = vadd.s32 %v786, 1
    %v791 = vsel %vm789, %v790, %v786
    %v792 = vadd.s32 %v787, %v791
    %v793 = vadd.s32 %v792, 536870912
    %v794 = vshrl.u32 %v793, 30
    %v795 = vshll.u32 %v794, 30
    %v796 = vsub.s32 %v792, %v795
    %vm797 = vcmp.lt.s32.totalorder %v796, 0
    %v798 = vsub.s32 0, %v796
    %v799 = vsel %vm797, %v798, %v796
    %v800 = vclz %v799
    %v801 = vsub.s32 %v800, 2
    %vm802 = vcmp.gt.s32.totalorder 0, %v801
    %v803 = vsel %vm802, 0, %v801
    %v804 = vsub.s32 32, %v803
    %v805 = vshll.u32 %v796, %v803
    %v806 = vshrl.u32 %v788, %v804
    %v807 = vor.u32 %v805, %v806
    %v808 = vsub.s32 4294967266, %v803
    %v809 = vadd.s32 %v808, 127
    %v810 = vshll.u32 %v809, 23
    %v811 = vor.u32 4788187, %v810
    %v812 = vand.u32 2147483647, %v811
    %v814 = vcvt.s32.f32 %v807
    %v815 = vmul.f32 %v814, %v812
    %v816 = vxor.u32 %v815, 2147483648
    %v817 = vsel %vm734, %v816, %v815
    %v818 = vsub.s32 4, %v794
    %v819 = vsel %vm734, %v818, %v794
    %v820 = vsel %vm733, %v731, %v817
    %v821 = vsel %vm733, 0, %v819
    %v822 = vcosq.f32.pop %v820
    %v823 = vsinq.f32.pop %v820
    %vm824 = vweird.f32 %v731
    %v825 = vand.u32 %v821, 3
    %vm826 = vcmp.lt.s32.totalorder %v825, 2
    %vm827 = vcmp.eq.s32.totalorder %v825, 0
    %v828 = vxor.u32 %v823, 2147483648
    %v829 = vsel %vm827, %v822, %v828
    %vm830 = vcmp.eq.s32.totalorder %v825, 2
    %v831 = vxor.u32 %v822, 2147483648
    %v832 = vsel %vm830, %v831, %v823
    %v833 = vsel %vm826, %v829, %v832
    %v834 = vsel %vm824, nan, %v833
    %v835 = vmul.f32 %v141, %v834
    %v836 = vadd.f32 %v835, %v143
    %v837 = vmul.f32 %v145, %v836
    %v838 = vadd.f32 %v837, %v147
    %s839 = scalar_lea.vmem %s2, 48
    %840 = vst [vmem:[%s839] sm:$0xff] %v838
    %v841 = vsub.f32 %v730, %v836
    %v842 = vmul.f32 %v151, %v841
    %s843 = scalar_lea.vmem %s1, 56
    %v844 = vld [vmem:[%s843] sm:$0xff]
    %v845 = vadd.f32 %v844, %v842
    %v846 = vmul.f32 %v845, 3.1415927
    %v847 = vand.u32 2147483647, %v846
    %vm848 = vcmp.le.f32.partialorder %v847, 0.7853982
    %vm849 = vcmp.lt.s32.totalorder %v846, 0
    %v850 = vand.u32 %v846, 2139095040
    %v851 = vshrl.u32 %v850, 23
    %v852 = vsub.s32 %v851, 127
    %v853 = vand.u32 2147483647, %v846
    %v854 = vand.u32 %v853, 8388607
    %v855 = vor.u32 %v854, 8388608
    %v856 = vsub.s32 0, %v855
    %v857 = vadd.s32 %v852, 1
    %vm858 = vcmp.gt.s32.totalorder %v857, 0
    %v859 = vsel %vm858, %v857, 0
    %v860 = vshrl.u32 %v859, 5
    %v861 = vand.u32 %v859, 31
    %v862 = vsub.s32 32, %v861
    %v863 = vshrl.u32 683565275, %v862
    %v864 = vshll.u32 683565275, %v861
    %v865 = vshrl.u32 2475754826, %v862
    %v866 = vor.u32 %v864, %v865
    %v867 = vshll.u32 2475754826, %v861
    %v868 = vshrl.u32 2131351028, %v862
    %v869 = vor.u32 %v867, %v868
    %v870 = vshll.u32 2131351028, %v861
    %v871 = vshrl.u32 2102212464, %v862
    %v872 = vor.u32 %v870, %v871
    %v873 = vshll.u32 2102212464, %v861
    %v874 = vshrl.u32 920167782, %v862
    %v875 = vor.u32 %v873, %v874
    %v876 = vshll.u32 920167782, %v861
    %v877 = vshrl.u32 1326507024, %v862
    %v878 = vor.u32 %v876, %v877
    %vm879 = vcmp.lt.s32.totalorder %v860, 1
    %vm880 = vcmp.lt.s32.totalorder %v860, 2
    %vm881 = vcmp.lt.s32.totalorder %v860, 3
    %vm882 = vcmp.lt.s32.totalorder %v860, 4
    %v883 = vsel %vm879, %v863, %v866
    %v884 = vsel %vm882, %v872, 2102212464
    %v885 = vsel %vm881, %v869, %v884
    %v886 = vsel %vm880, %v883, %v885
    %v887 = vsel %vm879, %v866, %v869
    %v888 = vsel %vm882, %v875, 920167782
    %v889 = vsel %vm881, %v872, %v888
    %v890 = vsel %vm880, %v887, %v889
    %v891 = vsel %vm879, %v869, %v872
    %v892 = vsel %vm882, %v878, 1326507024
    %v893 = vsel %vm881, %v875, %v892
    %v894 = vsel %vm880, %v891, %v893
    %v895 = vshll.u32 %v855, 8
    %v896 = vmul.u32.u64.compose %v895, %v894
    %v897 = vextract.low.u32 %v896
    %v898 = vextract.high.u32 %v896
    %v899 = vmul.u32.u64.compose %v895, %v890
    %v900 = vextract.low.u32 %v899
    %v901 = vextract.high.u32 %v899
    %v902 = vmul.u32 %v895, %v886
    %v903 = vadd.s32 %v898, %v900
    %vm904 = vc.u32 %v898, %v900
    %v905 = vadd.s32 %v901, 1
    %v906 = vsel %vm904, %v905, %v901
    %v907 = vadd.s32 %v902, %v906
    %v908 = vadd.s32 %v907, 536870912
    %v909 = vshrl.u32 %v908, 30
    %v910 = vshll.u32 %v909, 30
    %v911 = vsub.s32 %v907, %v910
    %vm912 = vcmp.lt.s32.totalorder %v911, 0
    %v913 = vsub.s32 0, %v911
    %v914 = vsel %vm912, %v913, %v911
    %v915 = vclz %v914
    %v916 = vsub.s32 %v915, 2
    %vm917 = vcmp.gt.s32.totalorder 0, %v916
    %v918 = vsel %vm917, 0, %v916
    %v919 = vsub.s32 32, %v918
    %v920 = vshll.u32 %v911, %v918
    %v921 = vshrl.u32 %v903, %v919
    %v922 = vor.u32 %v920, %v921
    %v923 = vsub.s32 4294967266, %v918
    %v924 = vadd.s32 %v923, 127
    %v925 = vshll.u32 %v924, 23
    %v926 = vor.u32 4788187, %v925
    %v927 = vand.u32 2147483647, %v926
    %v929 = vcvt.s32.f32 %v922
    %v930 = vmul.f32 %v929, %v927
    %v931 = vxor.u32 %v930, 2147483648
    %v932 = vsel %vm849, %v931, %v930
    %v933 = vsub.s32 4, %v909
    %v934 = vsel %vm849, %v933, %v909
    %v935 = vsel %vm848, %v846, %v932
    %v936 = vsel %vm848, 0, %v934
    %v937 = vcosq.f32.pop %v935
    %v938 = vsinq.f32.pop %v935
    %vm939 = vweird.f32 %v846
    %v940 = vand.u32 %v936, 3
    %vm941 = vcmp.lt.s32.totalorder %v940, 2
    %vm942 = vcmp.eq.s32.totalorder %v940, 0
    %v943 = vxor.u32 %v938, 2147483648
    %v944 = vsel %vm942, %v937, %v943
    %vm945 = vcmp.eq.s32.totalorder %v940, 2
    %v946 = vxor.u32 %v937, 2147483648
    %v947 = vsel %vm945, %v946, %v938
    %v948 = vsel %vm941, %v944, %v947
    %v949 = vsel %vm939, nan, %v948
    %v950 = vmul.f32 %v141, %v949
    %v951 = vadd.f32 %v950, %v143
    %v952 = vmul.f32 %v145, %v951
    %v953 = vadd.f32 %v952, %v147
    %s954 = scalar_lea.vmem %s2, 56
    %955 = vst [vmem:[%s954] sm:$0xff] %v953
    %v956 = vsub.f32 %v845, %v951
    %v957 = vmul.f32 %v151, %v956
    %958 = vst [vmem:[#allocation2] sm:$0xff] %v957
    // Predicated region
    $region18: #{neural_adder.1} parent=1 // pred_check
      _
    $region19: #{neural_adder.1} parent=1 // pred_check_branch
      %960 = sbr.rel (0) target = $region21
    $region20: #{neural_adder.1} parent=1 // pred_region
      _
    $region21: #{neural_adder.1} parent=1 // pred_fallthru
      _
    // Predicated region
    $region22: #{neural_adder.1} parent=1 // pred_check
      _
    $region23: #{neural_adder.1} parent=1 // pred_check_branch
      %962 = sbr.rel (0) target = $region25
    $region24: #{neural_adder.1} parent=1 // pred_region
      _
    $region25: #{neural_adder.1} parent=1 // pred_fallthru
      _
    %963 = vsyncpa [#allocation4], 1

</llo_original>
